<compile_context>
chip_gen: v7x
topology: tpu7x:2x2x1
jax: 0.10.0
libtpu: 0.0.40
codegen_flags: <defaults>
</compile_context>

<pallas_src>
import functools

import jax
import jax.numpy as jnp
from jax import lax
from jax.experimental import pallas as pl
from jax.experimental.pallas import tpu as pltpu


def _nconv_kernel(x_ref, a_ref, o_ref, *, tn):
    # x_ref: (TN, V, C)   a_ref: (V, W)   o_ref: (TN, W, C)
    a = a_ref[...]

    def one(n):
        xn = x_ref[n]                                    # (V, C)
        # out[w, c] = sum_v A[v, w] * x[v, c]  ==  A^T @ x[n]  (MXU, f32 accum)
        on = lax.dot_general(
            a, xn,
            dimension_numbers=(((0,), (0,)), ((), ())),
            preferred_element_type=jnp.float32,
        )                                                # (W, C)
        o_ref[n] = on.astype(o_ref.dtype)

    if tn <= 8:
        # Short fixed trip count: static unroll gives the LLO scheduler full visibility.
        for n in range(tn):
            one(n)
    else:
        def body(n, carry):
            one(n)
            return carry
        lax.fori_loop(0, tn, body, 0)


def _pick_tn(n, v, w, c, itemsize, target_block_bytes=2 * 1024 * 1024):
    """Batch elements per grid step.

    Target ~2 MiB per x/out block (>= ~85% of HBM roofline per the tiling
    measurements) while staying far inside every generation's scoped VMEM with
    double buffering (v5e 16 MiB default, v7x 32 MiB of 64 MiB physical).
    """
    per_elem = max(v, w) * c * itemsize
    tn = max(1, target_block_bytes // per_elem)
    if n > 1:
        tn = min(tn, -(-n // 2))          # keep grid length >= 2 for v7x's 2 TCs
    return int(min(tn, n))


def nconv(x, A, *, tn=None):
    """Pallas equivalent of torch.einsum('nvc,vw->nwc', (x, A.to(x))).contiguous()."""
    N, V, C = x.shape
    Va, W = A.shape
    assert Va == V, f"A first dim {Va} must match x node dim {V}"
    A = A.astype(x.dtype)                                # mirrors A.to(x)

    itemsize = jnp.dtype(x.dtype).itemsize
    if tn is None:
        tn = _pick_tn(N, V, W, C, itemsize)
    n_blocks = pl.cdiv(N, tn)
    n_pad = n_blocks * tn
    if n_pad != N:                                       # handle N % tn != 0
        x = jnp.pad(x, ((0, n_pad - N), (0, 0), (0, 0)))

    cost = pl.CostEstimate(
        flops=int(2 * N * V * W * C),
        transcendentals=0,
        bytes_accessed=int((N * V * C + V * W + N * W * C) * itemsize),
    )

    out = pl.pallas_call(
        functools.partial(_nconv_kernel, tn=tn),
        out_shape=jax.ShapeDtypeStruct((n_pad, W, C), x.dtype),
        grid_spec=pltpu.PrefetchScalarGridSpec(
            num_scalar_prefetch=0,
            grid=(n_blocks,),
            in_specs=[
                pl.BlockSpec((tn, V, C), lambda i: (i, 0, 0)),   # TN-batch slab
                pl.BlockSpec((V, W), lambda i: (0, 0)),          # A: fetched once, resident
            ],
            out_specs=pl.BlockSpec((tn, W, C), lambda i: (i, 0, 0)),
        ),
        compiler_params=pltpu.CompilerParams(
            dimension_semantics=("parallel",),
            vmem_limit_bytes=32 * 1024 * 1024,
        ),
        cost_estimate=cost,
    )(x, A)

    return out[:N] if n_pad != N else out


if __name__ == "__main__":
    # Small deterministic example: batch=2, nodes V=16 (-> W=16), channels=32.
    key = jax.random.PRNGKey(0)
    kx, ka = jax.random.split(key)
    N, V, W, C = 2, 16, 16, 32
    x = jax.random.normal(kx, (N, V, C), dtype=jnp.float32)
    A = jax.random.normal(ka, (V, W), dtype=jnp.float32)

    # f32 path (matches the torch module exactly).
    out = jax.block_until_ready(nconv(x, A))
    ref = jnp.einsum("nvc,vw->nwc", x, A)
    assert out.shape == (N, W, C), out.shape
    assert out.dtype == x.dtype
    assert jnp.allclose(out, ref, atol=1e-3, rtol=1e-3), float(jnp.max(jnp.abs(out - ref)))

    # bf16 streaming path (perf feedback: op is HBM-bound, so bf16 halves bytes moved).
    xb = x.astype(jnp.bfloat16)
    out_bf = jax.block_until_ready(nconv(xb, A))
    ref_bf = jnp.einsum(
        "nvc,vw->nwc",
        xb.astype(jnp.float32),
        A.astype(jnp.bfloat16).astype(jnp.float32),
    )
    assert out_bf.shape == (N, W, C)
    assert out_bf.dtype == jnp.bfloat16
    assert jnp.allclose(out_bf.astype(jnp.float32), ref_bf, atol=0.2, rtol=0.05)

    print("KERNEL_OK")
</pallas_src>

<mosaic_0001>
module attributes {stable_mosaic.version = 11 : i64} {
  func.func @_nconv_kernel(%arg0: i32, %arg1: memref<1x16x32xf32, #tpu.memory_space<vmem>>, %arg2: memref<16x16xf32, #tpu.memory_space<vmem>>, %arg3: memref<1x16x32xf32, #tpu.memory_space<vmem>>) attributes {dimension_semantics = [#tpu.dimension_semantics<parallel>], iteration_bounds = array<i64: 2>, scalar_prefetch = 0 : i64, scratch_operands = 0 : i64, tpu.core_type = #tpu.core_type<tc>, window_params = [{transform_indices = @transform_0, window_bounds = array<i64: 1, 16, 32>}, {pipeline_mode = #tpu.pipeline_mode<synchronous>, transform_indices = @transform_1, window_bounds = array<i64: 16, 16>}, {transform_indices = @transform_2, window_bounds = array<i64: 1, 16, 32>}]} {
    %c0 = arith.constant 0 : index
    %c0_0 = arith.constant 0 : index
    %0 = vector.load %arg2[%c0, %c0_0] : memref<16x16xf32, #tpu.memory_space<vmem>>, vector<16x16xf32>
    %c0_1 = arith.constant 0 : index
    %c0_2 = arith.constant 0 : index
    %c0_3 = arith.constant 0 : index
    %1 = vector.load %arg1[%c0_1, %c0_2, %c0_3] : memref<1x16x32xf32, #tpu.memory_space<vmem>>, vector<1x16x32xf32>
    %2 = vector.shape_cast %1 : vector<1x16x32xf32> to vector<16x32xf32>
    %cst = arith.constant dense<0.000000e+00> : vector<16x32xf32>
    %3 = tpu.matmul %0, %2, %cst {dimension_numbers = #tpu.dot_dimension_numbers<[0], [0], [1], [1], [0, 1, 1, 1], [], []>} : vector<16x16xf32>, vector<16x32xf32>, vector<16x32xf32> -> vector<16x32xf32>
    %c0_4 = arith.constant 0 : index
    %c0_5 = arith.constant 0 : index
    %c0_6 = arith.constant 0 : index
    %4 = vector.load %arg3[%c0_4, %c0_5, %c0_6] : memref<1x16x32xf32, #tpu.memory_space<vmem>>, vector<1x16x32xf32>
    %5 = vector.shape_cast %4 : vector<1x16x32xf32> to vector<16x32xf32>
    %6 = vector.shape_cast %3 : vector<16x32xf32> to vector<1x16x32xf32>
    tpu.vector_store %arg3[%c0_4, %c0_5, %c0_6], %6 {strides = array<i32>} : memref<1x16x32xf32, #tpu.memory_space<vmem>>, vector<1x16x32xf32>,
    return
  }
  func.func @transform_0(%arg0: i32) -> (i32, i32, i32) {
    %c0_i32 = arith.constant 0 : i32
    %c0_i32_0 = arith.constant 0 : i32
    %c0_i32_1 = arith.constant 0 : i32
    return %arg0, %c0_i32, %c0_i32_0 : i32, i32, i32
  }
  func.func @transform_1(%arg0: i32) -> (i32, i32) {
    %c0_i32 = arith.constant 0 : i32
    %c0_i32_0 = arith.constant 0 : i32
    %c0_i32_1 = arith.constant 0 : i32
    return %c0_i32, %c0_i32_0 : i32, i32
  }
  func.func @transform_2(%arg0: i32) -> (i32, i32, i32) {
    %c0_i32 = arith.constant 0 : i32
    %c0_i32_0 = arith.constant 0 : i32
    %c0_i32_1 = arith.constant 0 : i32
    return %arg0, %c0_i32, %c0_i32_0 : i32, i32, i32
  }
}

</mosaic_0001>

<llo_original>
// kernel: tpu_custom_call.1
$region0: #{tpu_custom_call.1}
  #allocation0 [shape = 'u32[]', space=smem, size = 0x4, offset = 0x4, fixed_abs, tag = 'smem constant byte address 0x4 - core index']
  #allocation1 [shape = 'u32[144,128]{1,0:T(1,128)}', space=vmem, size = 0x12000, scoped, tag = 'internal scratch']
  %s0 = inlined_call_operand.hbm [shape: f32[2,16,32], index: 0, kind: input, shape index: {}]
  %s1 = inlined_call_operand.hbm [shape: f32[16,16], index: 1, kind: input, shape index: {}]
  %s2 = inlined_call_operand.hbm [shape: f32[2,16,32], index: 2, kind: output, shape index: {}]
  %s3 = sld [smem:[#allocation0]]
  $region49: #{tpu_custom_call.1} parent=0
    _
  %s5 = ssub.s32 1, %s3
  %s6 = scalar_select 0, %s5, %s3
  $region1: #{tpu_custom_call.1} parent=0
    #allocation2 [shape = 'u8[16384]{0}', space=vmem, size = 0x4000, scoped, tag = 'input window, operand 0']
    #allocation3 [shape = 's32[2]{0}', space=sflag, size = 0x8, scoped, tag = 'scoped memory for tpu_custom_call.1']
    #allocation4 [shape = 's32[2]{0}', space=sflag, size = 0x8, scoped, tag = 'scoped memory for tpu_custom_call.1']
    #allocation5 [shape = 'u8[8192]{0}', space=vmem, size = 0x2000, scoped, tag = 'input window, operand 1, single buffered']
    #allocation6 [shape = 's32[1]{0}', space=sflag, size = 0x4, scoped, tag = 'scoped memory for tpu_custom_call.1']
    #allocation7 [shape = 'u8[16384]{0}', space=vmem, size = 0x4000, scoped, tag = 'output window, operand 0']
    %7 = vsyncpa [#allocation3], 0
    %s8 = scalar_lea.sflag [#allocation3], 1
    %9 = vsyncpa %s8, 0
    %10 = vsyncpa [#allocation6], 0
    %11 = vsyncpa [#allocation4], 0
    %s12 = scalar_lea.sflag [#allocation4], 1
    %13 = vsyncpa %s12, 0
    loop: start=0, step=1, limit=4
    $region2: #{tpu_custom_call.1} parent=1 // loop_pre_header
      _
    $region3: #{tpu_custom_call.1} parent=1 // loop_header
      %s15 = sphi 0, %s19
      %p16 = scmp.ge.s32.totalorder %s15, 4
      %s25 = sphi 0, %s27
      %s28 = sphi 0, %s25
      %s29 = sphi 0, %s28
      %s45 = sphi 0, %s29
      %s49 = sphi 0, %s49
      %s51 = sphi 0, %s49
      %s52 = sphi 0, %s51
      %s66 = sphi 0, %s52
      %s72 = sphi 0, %s74
      %s75 = sphi 0, %s72
      %s76 = sphi 0, %s75
      %s92 = sphi 0, %s76
    $region4: #{tpu_custom_call.1} parent=1 // loop_header_branch
      %18 = sbr.rel (%p16) target = $region8
    $region5: #{tpu_custom_call.1} parent=1 // loop_body
      %s20 = ssub.s32 %s15, 1
      %s21 = ssub.s32 %s15, 2
      %s22 = sadd.s32 %s15, 1
      %s23 = ssub.s32 %s15, %s22
      %p24 = scmp.eq.s32.totalorder %s23, 0
      %s26 = sadd.s32 %s25, 1
      %s27 = scalar_select %p24, %s25, %s26
      %p30 = pneg %p24
      %p31 = scmp.eq.s32.totalorder %s15, 1
      %p32 = por %p30, %p31
      %p33 = scmp.ne.s32.totalorder %s25, %s28
      %p34 = scmp.eq.s32.totalorder %s15, 0
      %p35 = por %p33, %p34
      %p36 = scmp.ne.s32.totalorder %s25, %s28
      %p37 = scmp.eq.s32.totalorder %s20, 1
      %p38 = por %p36, %p37
      %p39 = scmp.ne.s32.totalorder %s28, %s29
      %p40 = scmp.eq.s32.totalorder %s20, 0
      %p41 = por %p39, %p40
      %p42 = scmp.ne.s32.totalorder %s28, %s29
      %p43 = scmp.eq.s32.totalorder %s21, 1
      %p44 = por %p42, %p43
      %p46 = scmp.ne.s32.totalorder %s29, %s45
      %p47 = scmp.eq.s32.totalorder %s21, 0
      %p48 = por %p46, %p47
      %s50 = sadd.s32 %s49, 1
      %p53 = scmp.eq.s32.totalorder %s15, 1
      %p54 = scmp.ne.s32.totalorder %s49, %s51
      %p55 = scmp.eq.s32.totalorder %s15, 0
      %p56 = por %p54, %p55
      %p57 = scmp.ne.s32.totalorder %s49, %s51
      %p58 = scmp.eq.s32.totalorder %s20, 1
      %p59 = por %p57, %p58
      %p60 = scmp.ne.s32.totalorder %s51, %s52
      %p61 = scmp.eq.s32.totalorder %s20, 0
      %p62 = por %p60, %p61
      %p63 = scmp.ne.s32.totalorder %s51, %s52
      %p64 = scmp.eq.s32.totalorder %s21, 1
      %p65 = por %p63, %p64
      %p67 = scmp.ne.s32.totalorder %s52, %s66
      %p68 = scmp.eq.s32.totalorder %s21, 0
      %p69 = por %p67, %p68
      %s70 = ssub.s32 %s15, %s22
      %p71 = scmp.eq.s32.totalorder %s70, 0
      %s73 = sadd.s32 %s72, 1
      %s74 = scalar_select %p71, %s72, %s73
      %p77 = pneg %p71
      %p78 = scmp.eq.s32.totalorder %s15, 1
      %p79 = por %p77, %p78
      %p80 = scmp.ne.s32.totalorder %s72, %s75
      %p81 = scmp.eq.s32.totalorder %s15, 0
      %p82 = por %p80, %p81
      %p83 = scmp.ne.s32.totalorder %s72, %s75
      %p84 = scmp.eq.s32.totalorder %s20, 1
      %p85 = por %p83, %p84
      %p86 = scmp.ne.s32.totalorder %s75, %s76
      %p87 = scmp.eq.s32.totalorder %s20, 0
      %p88 = por %p86, %p87
      %p89 = scmp.ne.s32.totalorder %s75, %s76
      %p90 = scmp.eq.s32.totalorder %s21, 1
      %p91 = por %p89, %p90
      %p93 = scmp.ne.s32.totalorder %s76, %s92
      %p94 = scmp.eq.s32.totalorder %s21, 0
      %p95 = por %p93, %p94
      %p96 = scmp.le.s32.totalorder 1, %s15
      %p97 = scmp.lt.s32.totalorder %s15, 3
      %p98 = pnand %p96, %p97
      %p99 = pneg %p98
      // Predicated region
      $region9: #{tpu_custom_call.1} parent=5 // pred_check
        _
      $region10: #{tpu_custom_call.1} parent=5 // pred_check_branch
        %101 = sbr.rel (%p98) target = $region12
      $region11: #{tpu_custom_call.1} parent=5 // pred_region
        %s102 = ssub.s32 %s15, 1
        // Predicated region
        $region13: #{tpu_custom_call.1} parent=11 // pred_check
          %p103 = pneg %p62
        $region14: #{tpu_custom_call.1} parent=11 // pred_check_branch
          %105 = sbr.rel (%p103) target = $region16
        $region15: #{tpu_custom_call.1} parent=11 // pred_region
          %s107 = ssub.s32 256, 256
          %108 = vsyncadd [#allocation6], %s107
          %s109 = sshll.u32 [#allocation5], 4
          %s110 = int_to_ptr.vmem [resolvable:$true] %s109
          %115 = dma.hbm_to_vmem [thread:$0]  %s1, 256, %s110, [#allocation6], 128, 128, 8
        $region16: #{tpu_custom_call.1} parent=11 // pred_fallthru
          _
      $region12: #{tpu_custom_call.1} parent=5 // pred_fallthru
        _
      %p116 = scmp.lt.s32.totalorder %s15, 2
      // Predicated region
      $region17: #{tpu_custom_call.1} parent=5 // pred_check
        %p117 = pneg %p116
      $region18: #{tpu_custom_call.1} parent=5 // pred_check_branch
        %119 = sbr.rel (%p117) target = $region20
      $region19: #{tpu_custom_call.1} parent=5 // pred_region
        // Predicated region
        $region21: #{tpu_custom_call.1} parent=19 // pred_check
          %p120 = pneg %p35
        $region22: #{tpu_custom_call.1} parent=19 // pred_check_branch
          %122 = sbr.rel (%p120) target = $region24
        $region23: #{tpu_custom_call.1} parent=19 // pred_region
          %s123 = sand.u32 %s25, 1
          %s124 = scalar_lea.sflag [#allocation3], %s123
          %s125 = sand.u32 %s25, 1
          %s126 = smul.addr %s125, 16
          %s127 = scalar_lea.vmem [#allocation2], %s126
          %s129 = ssub.s32 256, 256
          %130 = vsyncadd %s124, %s129
          %s131 = smul.addr %s15, 2
          %s132 = smul.addr %s131, 128
          %s133 = scalar_lea.hbm %s0, %s132
          %s134 = sshll.u32 %s127, 4
          %s135 = int_to_ptr.vmem [resolvable:$true] %s134
          %140 = dma.hbm_to_vmem [thread:$0]  %s133, 256, %s135, %s124, 128, 128, 8
        $region24: #{tpu_custom_call.1} parent=19 // pred_fallthru
          _
      $region20: #{tpu_custom_call.1} parent=5 // pred_fallthru
        _
      %p141 = scmp.le.s32.totalorder 1, %s15
      %p142 = scmp.lt.s32.totalorder %s15, 3
      %p143 = pnand %p141, %p142
      %p144 = pneg %p143
      // Predicated region
      $region25: #{tpu_custom_call.1} parent=5 // pred_check
        _
      $region26: #{tpu_custom_call.1} parent=5 // pred_check_branch
        %146 = sbr.rel (%p143) target = $region28
      $region27: #{tpu_custom_call.1} parent=5 // pred_region
        %s147 = ssub.s32 %s15, 1
        %s148 = sand.u32 %s28, 1
        %s149 = scalar_lea.sflag [#allocation3], %s148
        %s150 = sand.u32 %s28, 1
        %s151 = smul.addr %s150, 16
        %s152 = scalar_lea.vmem [#allocation2], %s151
        // Predicated region
        $region29: #{tpu_custom_call.1} parent=27 // pred_check
          %p153 = pneg %p41
        $region30: #{tpu_custom_call.1} parent=27 // pred_check_branch
          %155 = sbr.rel (%p153) target = $region32
        $region31: #{tpu_custom_call.1} parent=27 // pred_region
          %156 = dma.done %s149, 256
        $region32: #{tpu_custom_call.1} parent=27 // pred_fallthru
          _
        // Predicated region
        $region33: #{tpu_custom_call.1} parent=27 // pred_check
          %p157 = pneg %p62
        $region34: #{tpu_custom_call.1} parent=27 // pred_check_branch
          %159 = sbr.rel (%p157) target = $region36
        $region35: #{tpu_custom_call.1} parent=27 // pred_region
          %160 = dma.done [#allocation6], 256
        $region36: #{tpu_custom_call.1} parent=27 // pred_fallthru
          _
        %s161 = sand.u32 %s28, 1
        %s162 = scalar_lea.sflag [#allocation3], %s161
        %s163 = sand.u32 %s28, 1
        %s164 = smul.addr %s163, 16
        %s165 = scalar_lea.vmem [#allocation2], %s164
        %p166 = pneg %p41
        %p167 = pneg %p38
        %p168 = pneg %p62
        %p169 = pneg %p59
        %p170 = pneg %p88
        %p171 = pneg %p85
        %s172 = sand.u32 %s75, 1
        %s173 = scalar_lea.sflag [#allocation4], %s172
        %s174 = sand.u32 %s75, 1
        %s175 = smul.addr %s174, 16
        %s176 = scalar_lea.vmem [#allocation7], %s175
        %v177 = vld [vmem:[#allocation5] sm:$0xff]
        %v178 = vld [vmem:[#allocation5 + $0x8] sm:$0xff]
        %v179 = vld [vmem:[%s152] sm:$0xff]
        %v180 = vld [vmem:[%s152 + $0x8] sm:$0xff]
        %181 = vxpose.xlu0.b32.start [1/16] %v177, 128
        %182 = vxpose.xlu0.b32.cont [2/16] %v178, 128
        %183 = vxpose.xlu0.b32.cont [3/16] 0.0, 128
        %184 = vxpose.xlu0.b32.cont [4/16] 0.0, 128
        %185 = vxpose.xlu0.b32.cont [5/16] 0.0, 128
        %186 = vxpose.xlu0.b32.cont [6/16] 0.0, 128
        %187 = vxpose.xlu0.b32.cont [7/16] 0.0, 128
        %188 = vxpose.xlu0.b32.cont [8/16] 0.0, 128
        %189 = vxpose.xlu0.b32.cont [9/16] 0.0, 128
        %190 = vxpose.xlu0.b32.cont [10/16] 0.0, 128
        %191 = vxpose.xlu0.b32.cont [11/16] 0.0, 128
        %192 = vxpose.xlu0.b32.cont [12/16] 0.0, 128
        %193 = vxpose.xlu0.b32.cont [13/16] 0.0, 128
        %194 = vxpose.xlu0.b32.cont [14/16] 0.0, 128
        %195 = vxpose.xlu0.b32.cont [15/16] 0.0, 128
        %196 = vxpose.xlu0.b32.end [16/16] 0.0, 128
        %v197 = vpop.trf.xlu0
        %v198 = vpop.trf.xlu0
        %v199 = vpop.trf.xlu0
        %v200 = vpop.trf.xlu0
        %v201 = vpop.trf.xlu0
        %v202 = vpop.trf.xlu0
        %v203 = vpop.trf.xlu0
        %v204 = vpop.trf.xlu0
        %v205 = vpop.trf.xlu0
        %v206 = vpop.trf.xlu0
        %v207 = vpop.trf.xlu0
        %v208 = vpop.trf.xlu0
        %v209 = vpop.trf.xlu0
        %v210 = vpop.trf.xlu0
        %v211 = vpop.trf.xlu0
        %v212 = vpop.trf.xlu0
        %vm213 = vcmask 130048
        %v215 = vsel %vm213, %v197, 0
        %v218 = vsel %vm213, %v198, 0
        %220 = vmatprep.subr.mxu0 0.0
        %221 = vmatpush1.msra.mxu0 %v179
        %222 = vmatprep.subr.mxu0 0.0
        %223 = vmatpush1.msra.mxu0 %v180
        %224 = vmatprep.subr.mxu0 0.0
        %225 = vmatpush1.msra.mxu0 0.0
        %226 = vmatprep.subr.mxu0 0.0
        %227 = vmatpush1.msra.mxu0 0.0
        %228 = vmatprep.subr.mxu0 0.0
        %229 = vmatpush1.msra.mxu0 0.0
        %230 = vmatprep.subr.mxu0 0.0
        %231 = vmatpush1.msra.mxu0 0.0
        %232 = vmatprep.subr.mxu0 0.0
        %233 = vmatpush1.msra.mxu0 0.0
        %234 = vmatprep.subr.mxu0 0.0
        %235 = vmatpush1.msra.mxu0 0.0
        %236 = vmatprep.subr.mxu0 0.0
        %237 = vmatpush1.msra.mxu0 0.0
        %238 = vmatprep.subr.mxu0 0.0
        %239 = vmatpush1.msra.mxu0 0.0
        %240 = vmatprep.subr.mxu0 0.0
        %241 = vmatpush1.msra.mxu0 0.0
        %242 = vmatprep.subr.mxu0 0.0
        %243 = vmatpush1.msra.mxu0 0.0
        %244 = vmatprep.subr.mxu0 0.0
        %245 = vmatpush1.msra.mxu0 0.0
        %246 = vmatprep.subr.mxu0 0.0
        %247 = vmatpush1.msra.mxu0 0.0
        %248 = vmatprep.subr.mxu0 0.0
        %249 = vmatpush1.msra.mxu0 0.0
        %250 = vmatprep.subr.mxu0 0.0
        %251 = vmatpush1.msra.mxu0 0.0
        %252 = vmatprep.subr.mxu0 0.0
        %253 = vmatpush1.msra.mxu0 0.0
        %254 = vmatprep.subr.mxu0 0.0
        %255 = vmatpush1.msra.mxu0 0.0
        %256 = vmatprep.subr.mxu0 0.0
        %257 = vmatpush1.msra.mxu0 0.0
        %258 = vmatprep.subr.mxu0 0.0
        %259 = vmatpush1.msra.mxu0 0.0
        %260 = vmatprep.subr.mxu0 0.0
        %261 = vmatpush1.msra.mxu0 0.0
        %262 = vmatprep.subr.mxu0 0.0
        %263 = vmatpush1.msra.mxu0 0.0
        %264 = vmatprep.subr.mxu0 0.0
        %265 = vmatpush1.msra.mxu0 0.0
        %266 = vmatprep.subr.mxu0 0.0
        %267 = vmatpush1.msra.mxu0 0.0
        %268 = vmatprep.subr.mxu0 0.0
        %269 = vmatpush1.msra.mxu0 0.0
        %270 = vmatprep.subr.mxu0 0.0
        %271 = vmatpush1.msra.mxu0 0.0
        %272 = vmatprep.subr.mxu0 0.0
        %273 = vmatpush1.msra.mxu0 0.0
        %274 = vmatprep.subr.mxu0 0.0
        %275 = vmatpush1.msra.mxu0 0.0
        %276 = vmatprep.subr.mxu0 0.0
        %277 = vmatpush1.msra.mxu0 0.0
        %278 = vmatprep.subr.mxu0 0.0
        %279 = vmatpush1.msra.mxu0 0.0
        %280 = vmatprep.subr.mxu0 0.0
        %281 = vmatpush1.msra.mxu0 0.0
        %282 = vmatprep.subr.mxu0 0.0
        %283 = vmatpush1.msra.mxu0 0.0
        %284 = vmatprep.mubr.f32.mxu0 0.0
        %285 = vmatmul.mubr.f32.gmra.mrb[0].mxu0 %v215
        %v286 = vpop.f32.mrb[0].mxu0
        %v287 = vadd.f32 0.0, %v286
        %v288 = vpop.f32.mrb[0].mxu0
        %289 = vmatprep.mubr.f32.mxu0 0.0
        %290 = vmatmul.mubr.f32.gmra.mrb[0].mxu0 %v218
        %v291 = vpop.f32.mrb[0].mxu0
        %v292 = vadd.f32 0.0, %v291
        %v293 = vpop.f32.mrb[0].mxu0
        %294 = vdwg.mxu0
        %vm295 = vcmask 261120
        %296 = vst.msk [vmem:[%s176] sm:$0xff] %vm295, %v287
        %297 = vst.msk [vmem:[%s176 + $0x8] sm:$0xff] %vm295, %v292
        %s298 = sand.u32 %s75, 1
        %s299 = scalar_lea.sflag [#allocation4], %s298
        %s300 = sand.u32 %s75, 1
        %s301 = smul.addr %s300, 16
        %s302 = scalar_lea.vmem [#allocation7], %s301
        // Predicated region
        $region37: #{tpu_custom_call.1} parent=27 // pred_check
          %p303 = pneg %p85
        $region38: #{tpu_custom_call.1} parent=27 // pred_check_branch
          %305 = sbr.rel (%p303) target = $region40
        $region39: #{tpu_custom_call.1} parent=27 // pred_region
          %s307 = ssub.s32 256, 256
          %308 = vsyncadd %s299, %s307
          %s309 = smul.addr %s20, 2
          %s310 = smul.addr %s309, 128
          %s311 = scalar_lea.hbm %s2, %s310
          %s312 = sshll.u32 %s302, 4
          %s313 = int_to_ptr.vmem [resolvable:$true] %s312
          %318 = dma.vmem_to_hbm [thread:$0]  %s313, 256, %s311, %s299, 128, 128, 8
        $region40: #{tpu_custom_call.1} parent=27 // pred_fallthru
          _
      $region28: #{tpu_custom_call.1} parent=5 // pred_fallthru
        _
      %p319 = scmp.le.s32.totalorder 2, %s15
      // Predicated region
      $region41: #{tpu_custom_call.1} parent=5 // pred_check
        %p320 = pneg %p319
      $region42: #{tpu_custom_call.1} parent=5 // pred_check_branch
        %322 = sbr.rel (%p320) target = $region44
      $region43: #{tpu_custom_call.1} parent=5 // pred_region
        %s323 = ssub.s32 %s15, 2
        // Predicated region
        $region45: #{tpu_custom_call.1} parent=43 // pred_check
          %p324 = pneg %p91
        $region46: #{tpu_custom_call.1} parent=43 // pred_check_branch
          %326 = sbr.rel (%p324) target = $region48
        $region47: #{tpu_custom_call.1} parent=43 // pred_region
          %s327 = sand.u32 %s76, 1
          %s328 = scalar_lea.sflag [#allocation4], %s327
          %s329 = sand.u32 %s76, 1
          %s330 = smul.addr %s329, 16
          %s331 = scalar_lea.vmem [#allocation7], %s330
          %332 = dma.done %s328, 256
        $region48: #{tpu_custom_call.1} parent=43 // pred_fallthru
          _
      $region44: #{tpu_custom_call.1} parent=5 // pred_fallthru
        _
    $region6: #{tpu_custom_call.1} parent=1 // loop_footer
      %s19 = sadd.s32 1, %s15
    $region7: #{tpu_custom_call.1} parent=1 // loop_footer_branch
      %14 = sbr.rel target = $region3
    $region8: #{tpu_custom_call.1} parent=1 // loop_exit
      _
    %333 = vsyncpa [#allocation3], 1
    %s334 = scalar_lea.sflag [#allocation3], 1
    %335 = vsyncpa %s334, 1
    %336 = vsyncpa [#allocation6], 1
    %337 = vsyncpa [#allocation4], 1
    %s338 = scalar_lea.sflag [#allocation4], 1
    %339 = vsyncpa %s338, 1

</llo_original>
